<compile_context>
chip_gen: v5e
topology: v5e:2x2
jax: 0.10.0
libtpu: 0.0.40
codegen_flags: <defaults>
</compile_context>

<pallas_src>
import functools

import jax
import jax.numpy as jnp
from jax.experimental import pallas as pl
from jax.experimental.pallas import tpu as pltpu

N_HEADS = 8
OUTPUT_DIM = 128              # embed_dim hard-coded in NN.py
HEAD_DIM = OUTPUT_DIM // N_HEADS
LN_EPS = 1e-5                 # PyTorch LayerNorm default


def _round_up(x, m):
    return ((x + m - 1) // m) * m


# ----------------------------------------------------------------------------
# Kernel: one batch tile per grid step, everything in (features, batch) layout.
# ----------------------------------------------------------------------------
def fused_kernel(lig_t_ref,      # (ligand_dim, TILE_N)  ligand tile, transposed
                 w_fused_t_ref,  # (D, ligand_dim)       folded + centered chain^T
                 b_fused_ref,    # (D, 1)                folded + centered bias
                 gamma_ref,      # (D, 1)                LayerNorm gamma
                 beta_ref,       # (D, 1)                LayerNorm beta
                 w_fin_ref,      # (1, D)                final Linear(D,1) weight row
                 b_fin_ref,      # (1, 1)                final Linear bias
                 out_ref):       # (1, TILE_N)           lane-dense output row
    f32 = jnp.float32

    # attn_out^T (already feature-mean-centered): (D, TILE_N)
    x = jnp.dot(w_fused_t_ref[...], lig_t_ref[...],
                preferred_element_type=f32) + b_fused_ref[...]

    # LayerNorm over the feature axis (axis 0 in this layout).
    # Mean is zero by construction (weights centered offline), so only the
    # variance reduction remains.
    var = jnp.mean(x * x, axis=0, keepdims=True)               # (1, TILE_N)
    y = x * jax.lax.rsqrt(var + LN_EPS)                        # EUP rsqrt
    y = y * gamma_ref[...] + beta_ref[...]
    y = jnp.maximum(y, 0.0)                                    # ReLU

    # Final Linear(D, 1); batch stays on the lane axis -> lane-dense store.
    out_ref[...] = jnp.dot(w_fin_ref[...], y,
                           preferred_element_type=f32) + b_fin_ref[...]


# ----------------------------------------------------------------------------
# Wrapper
# ----------------------------------------------------------------------------
@functools.partial(jax.jit, static_argnames=("tile_n",))
def cross_attention_forward(protein, ligand, folded, tile_n=512):
    """Forward pass of CrossAttentionModel.  Output shape (N, 1)."""
    del protein  # output is mathematically independent of the protein branch
    assert tile_n % 128 == 0

    n = ligand.shape[0]
    ld = ligand.shape[1]
    d = folded["w_fused_t"].shape[0]

    tile = min(tile_n, _round_up(n, 128))       # lane-multiple batch tile
    n_pad = _round_up(n, tile)
    num_tiles = n_pad // tile

    # (features, batch) layout; zero-pad batch up to a tile multiple.
    lig_t = jnp.pad(ligand.T.astype(jnp.float32), ((0, 0), (0, n_pad - n)))

    out = pl.pallas_call(
        fused_kernel,
        out_shape=jax.ShapeDtypeStruct((1, n_pad), jnp.float32),
        grid=(num_tiles,),
        in_specs=[
            pl.BlockSpec((ld, tile), lambda i: (0, i)),   # ligand tile (pipelined)
            pl.BlockSpec((d, ld), lambda i: (0, 0)),      # resident weights
            pl.BlockSpec((d, 1), lambda i: (0, 0)),
            pl.BlockSpec((d, 1), lambda i: (0, 0)),
            pl.BlockSpec((d, 1), lambda i: (0, 0)),
            pl.BlockSpec((1, d), lambda i: (0, 0)),
            pl.BlockSpec((1, 1), lambda i: (0, 0)),
        ],
        out_specs=pl.BlockSpec((1, tile), lambda i: (0, i)),
        compiler_params=pltpu.CompilerParams(
            dimension_semantics=("parallel",),            # v7x dual-TC sharding
            vmem_limit_bytes=32 * 1024 * 1024,
        ),
    )(lig_t, folded["w_fused_t"], folded["b_fused"],
      folded["gamma"], folded["beta"], folded["w_fin"], folded["b_fin"])

    return out[:, :n].reshape(n, 1)


# ----------------------------------------------------------------------------
# Parameters (PyTorch nn.Linear weights pre-transposed to (in, out))
# ----------------------------------------------------------------------------
def make_params(key, protein_dim, ligand_dim, output_dim):
    D = output_dim
    ks = jax.random.split(key, 12)
    s = 0.05
    return dict(
        wp=jax.random.normal(ks[0], (protein_dim, D), jnp.float32) * s,
        bp=jax.random.normal(ks[1], (1, D), jnp.float32) * s,
        wl=jax.random.normal(ks[2], (ligand_dim, D), jnp.float32) * s,
        bl=jax.random.normal(ks[3], (1, D), jnp.float32) * s,
        wq=jax.random.normal(ks[4], (D, D), jnp.float32) * s,
        bq=jax.random.normal(ks[5], (1, D), jnp.float32) * s,
        wk=jax.random.normal(ks[6], (D, D), jnp.float32) * s,
        bk=jax.random.normal(ks[7], (1, D), jnp.float32) * s,
        wv=jax.random.normal(ks[8], (D, D), jnp.float32) * s,
        bv=jax.random.normal(ks[9], (1, D), jnp.float32) * s,
        wo=jax.random.normal(ks[10], (D, D), jnp.float32) * s,
        bo=jax.random.normal(ks[11], (1, D), jnp.float32) * s,
        gamma=jnp.ones((1, D), jnp.float32),
        beta=jnp.zeros((1, D), jnp.float32),
        wf=jax.random.normal(jax.random.fold_in(key, 99), (D, 1), jnp.float32) * s,
        bf=jnp.full((1, 1), 0.01, jnp.float32),
    )


def fold_params(P):
    """Offline fold of ligand_proj -> v_proj -> out_proj (length-1 softmax == 1),
    plus feature-mean centering so the LayerNorm mean drops out of the kernel."""
    w_fused = P["wl"] @ P["wv"] @ P["wo"]                         # (ligand_dim, D)
    b_fused = (P["bl"] @ P["wv"] + P["bv"]) @ P["wo"] + P["bo"]   # (1, D)
    # Center over the output-feature axis: mean_D(x) == 0 by construction.
    w_c = w_fused - jnp.mean(w_fused, axis=1, keepdims=True)
    b_c = b_fused - jnp.mean(b_fused)
    return dict(
        w_fused_t=jnp.asarray(w_c.T, jnp.float32),                # (D, ligand_dim)
        b_fused=jnp.asarray(b_c.reshape(-1, 1), jnp.float32),     # (D, 1)
        gamma=P["gamma"].reshape(-1, 1),                          # (D, 1)
        beta=P["beta"].reshape(-1, 1),                            # (D, 1)
        w_fin=P["wf"].T,                                          # (1, D)
        b_fin=P["bf"],                                            # (1, 1)
    )


# ----------------------------------------------------------------------------
# Pure-JAX reference of the full PyTorch forward (including the MHA math;
# the softmax over a single key evaluates to exactly 1).
# ----------------------------------------------------------------------------
def reference_forward(protein, ligand, P):
    pp = protein @ P["wp"] + P["bp"]
    lp = ligand @ P["wl"] + P["bl"]
    q = pp @ P["wq"] + P["bq"]
    k = lp @ P["wk"] + P["bk"]
    v = lp @ P["wv"] + P["bv"]
    n = q.shape[0]
    qh = q.reshape(n, N_HEADS, HEAD_DIM)
    kh = k.reshape(n, N_HEADS, HEAD_DIM)
    vh = v.reshape(n, N_HEADS, HEAD_DIM)
    scores = (qh * kh).sum(-1, keepdims=True) / jnp.sqrt(jnp.float32(HEAD_DIM))
    w = jax.nn.softmax(scores, axis=-1)            # length-1 key axis -> 1.0
    attn = (w * vh).reshape(n, OUTPUT_DIM)
    attn_out = attn @ P["wo"] + P["bo"]
    mu = attn_out.mean(-1, keepdims=True)
    var = ((attn_out - mu) ** 2).mean(-1, keepdims=True)
    y = (attn_out - mu) / jnp.sqrt(var + LN_EPS) * P["gamma"] + P["beta"]
    y = jnp.maximum(y, 0.0)
    return y @ P["wf"] + P["bf"]


if __name__ == "__main__":
    N = 8                   # batch of (protein, ligand) pairs
    protein_dim = 32
    ligand_dim = 16

    key = jax.random.PRNGKey(0)
    k_prot, k_lig, k_par = jax.random.split(key, 3)
    protein = jax.random.normal(k_prot, (N, protein_dim), jnp.float32)
    ligand = jax.random.normal(k_lig, (N, ligand_dim), jnp.float32)

    params = make_params(k_par, protein_dim, ligand_dim, OUTPUT_DIM)
    folded = fold_params(params)

    out = cross_attention_forward(protein, ligand, folded)
    out = jax.block_until_ready(out)

    ref = reference_forward(protein, ligand, params)
    assert out.shape == (N, 1), out.shape
    assert jnp.allclose(out, ref, atol=1e-4, rtol=1e-4), (out, ref)
    print("KERNEL_OK")
</pallas_src>

<mosaic_0001>
module attributes {stable_mosaic.version = 11 : i64} {
  func.func @fused_kernel(%arg0: i32, %arg1: memref<16x128xf32, #tpu.memory_space<vmem>>, %arg2: memref<128x16xf32, #tpu.memory_space<vmem>>, %arg3: memref<128x1xf32, #tpu.memory_space<vmem>>, %arg4: memref<128x1xf32, #tpu.memory_space<vmem>>, %arg5: memref<128x1xf32, #tpu.memory_space<vmem>>, %arg6: memref<1x128xf32, #tpu.memory_space<vmem>>, %arg7: memref<1x1xf32, #tpu.memory_space<vmem>>, %arg8: memref<1x128xf32, #tpu.memory_space<vmem>>) attributes {dimension_semantics = [#tpu.dimension_semantics<parallel>], iteration_bounds = array<i64: 1>, scalar_prefetch = 0 : i64, scratch_operands = 0 : i64, tpu.core_type = #tpu.core_type<tc>, window_params = [{transform_indices = @transform_0, window_bounds = array<i64: 16, 128>}, {pipeline_mode = #tpu.pipeline_mode<synchronous>, transform_indices = @transform_1, window_bounds = array<i64: 128, 16>}, {pipeline_mode = #tpu.pipeline_mode<synchronous>, transform_indices = @transform_2, window_bounds = array<i64: 128, 1>}, {pipeline_mode = #tpu.pipeline_mode<synchronous>, transform_indices = @transform_3, window_bounds = array<i64: 128, 1>}, {pipeline_mode = #tpu.pipeline_mode<synchronous>, transform_indices = @transform_4, window_bounds = array<i64: 128, 1>}, {pipeline_mode = #tpu.pipeline_mode<synchronous>, transform_indices = @transform_5, window_bounds = array<i64: 1, 128>}, {pipeline_mode = #tpu.pipeline_mode<synchronous>, transform_indices = @transform_6, window_bounds = array<i64: 1, 1>}, {transform_indices = @transform_7, window_bounds = array<i64: 1, 128>}]} {
    %c0 = arith.constant 0 : index
    %c0_0 = arith.constant 0 : index
    %0 = vector.load %arg2[%c0, %c0_0] : memref<128x16xf32, #tpu.memory_space<vmem>>, vector<128x16xf32>
    %c0_1 = arith.constant 0 : index
    %c0_2 = arith.constant 0 : index
    %1 = vector.load %arg1[%c0_1, %c0_2] : memref<16x128xf32, #tpu.memory_space<vmem>>, vector<16x128xf32>
    %cst = arith.constant dense<0.000000e+00> : vector<128x128xf32>
    %2 = tpu.matmul %0, %1, %cst {dimension_numbers = #tpu.dot_dimension_numbers<[1], [0], [0], [1], [0, 0, 1, 1], [], []>} : vector<128x16xf32>, vector<16x128xf32>, vector<128x128xf32> -> vector<128x128xf32>
    %c0_3 = arith.constant 0 : index
    %c0_4 = arith.constant 0 : index
    %3 = vector.load %arg3[%c0_3, %c0_4] : memref<128x1xf32, #tpu.memory_space<vmem>>, vector<128x1xf32>
    %4 = vector.broadcast %3 : vector<128x1xf32> to vector<128x128xf32>
    %5 = arith.addf %2, %4 : vector<128x128xf32>
    %6 = arith.mulf %5, %5 : vector<128x128xf32>
    %cst_5 = arith.constant dense<0.000000e+00> : vector<128xf32>
    %7 = vector.multi_reduction <add>, %6, %cst_5 [0] : vector<128x128xf32> to vector<128xf32>
    %8 = vector.shape_cast %7 : vector<128xf32> to vector<1x128xf32>
    %cst_6 = arith.constant 1.280000e+02 : f32
    %9 = vector.broadcast %cst_6 : f32 to vector<1x128xf32>
    %10 = arith.divf %8, %9 : vector<1x128xf32>
    %cst_7 = arith.constant 9.99999974E-6 : f32
    %11 = vector.broadcast %cst_7 : f32 to vector<1x128xf32>
    %12 = arith.addf %10, %11 : vector<1x128xf32>
    %13 = math.rsqrt %12 : vector<1x128xf32>
    %14 = vector.broadcast %13 : vector<1x128xf32> to vector<128x128xf32>
    %15 = arith.mulf %5, %14 : vector<128x128xf32>
    %c0_8 = arith.constant 0 : index
    %c0_9 = arith.constant 0 : index
    %16 = vector.load %arg4[%c0_8, %c0_9] : memref<128x1xf32, #tpu.memory_space<vmem>>, vector<128x1xf32>
    %17 = vector.broadcast %16 : vector<128x1xf32> to vector<128x128xf32>
    %18 = arith.mulf %15, %17 : vector<128x128xf32>
    %c0_10 = arith.constant 0 : index
    %c0_11 = arith.constant 0 : index
    %19 = vector.load %arg5[%c0_10, %c0_11] : memref<128x1xf32, #tpu.memory_space<vmem>>, vector<128x1xf32>
    %20 = vector.broadcast %19 : vector<128x1xf32> to vector<128x128xf32>
    %21 = arith.addf %18, %20 : vector<128x128xf32>
    %cst_12 = arith.constant 0.000000e+00 : f32
    %22 = vector.broadcast %cst_12 : f32 to vector<128x128xf32>
    %23 = arith.maximumf %21, %22 : vector<128x128xf32>
    %c0_13 = arith.constant 0 : index
    %c0_14 = arith.constant 0 : index
    %24 = vector.load %arg6[%c0_13, %c0_14] : memref<1x128xf32, #tpu.memory_space<vmem>>, vector<1x128xf32>
    %cst_15 = arith.constant dense<0.000000e+00> : vector<1x128xf32>
    %25 = tpu.matmul %24, %23, %cst_15 {dimension_numbers = #tpu.dot_dimension_numbers<[1], [0], [0], [1], [0, 0, 1, 1], [], []>} : vector<1x128xf32>, vector<128x128xf32>, vector<1x128xf32> -> vector<1x128xf32>
    %c0_16 = arith.constant 0 : index
    %c0_17 = arith.constant 0 : index
    %26 = vector.load %arg7[%c0_16, %c0_17] : memref<1x1xf32, #tpu.memory_space<vmem>>, vector<1x1xf32>
    %27 = vector.broadcast %26 : vector<1x1xf32> to vector<1x128xf32>
    %28 = arith.addf %25, %27 : vector<1x128xf32>
    %c0_18 = arith.constant 0 : index
    %c0_19 = arith.constant 0 : index
    %29 = vector.load %arg8[%c0_18, %c0_19] : memref<1x128xf32, #tpu.memory_space<vmem>>, vector<1x128xf32>
    tpu.vector_store %arg8[%c0_18, %c0_19], %28 {strides = array<i32>} : memref<1x128xf32, #tpu.memory_space<vmem>>, vector<1x128xf32>,
    return
  }
  func.func @transform_0(%arg0: i32) -> (i32, i32) {
    %c0_i32 = arith.constant 0 : i32
    %c0_i32_0 = arith.constant 0 : i32
    return %c0_i32, %arg0 : i32, i32
  }
  func.func @transform_1(%arg0: i32) -> (i32, i32) {
    %c0_i32 = arith.constant 0 : i32
    %c0_i32_0 = arith.constant 0 : i32
    %c0_i32_1 = arith.constant 0 : i32
    return %c0_i32, %c0_i32_0 : i32, i32
  }
  func.func @transform_2(%arg0: i32) -> (i32, i32) {
    %c0_i32 = arith.constant 0 : i32
    %c0_i32_0 = arith.constant 0 : i32
    %c0_i32_1 = arith.constant 0 : i32
    return %c0_i32, %c0_i32_0 : i32, i32
  }
  func.func @transform_3(%arg0: i32) -> (i32, i32) {
    %c0_i32 = arith.constant 0 : i32
    %c0_i32_0 = arith.constant 0 : i32
    %c0_i32_1 = arith.constant 0 : i32
    return %c0_i32, %c0_i32_0 : i32, i32
  }
  func.func @transform_4(%arg0: i32) -> (i32, i32) {
    %c0_i32 = arith.constant 0 : i32
    %c0_i32_0 = arith.constant 0 : i32
    %c0_i32_1 = arith.constant 0 : i32
    return %c0_i32, %c0_i32_0 : i32, i32
  }
  func.func @transform_5(%arg0: i32) -> (i32, i32) {
    %c0_i32 = arith.constant 0 : i32
    %c0_i32_0 = arith.constant 0 : i32
    %c0_i32_1 = arith.constant 0 : i32
    return %c0_i32, %c0_i32_0 : i32, i32
  }
  func.func @transform_6(%arg0: i32) -> (i32, i32) {
    %c0_i32 = arith.constant 0 : i32
    %c0_i32_0 = arith.constant 0 : i32
    %c0_i32_1 = arith.constant 0 : i32
    return %c0_i32, %c0_i32_0 : i32, i32
  }
  func.func @transform_7(%arg0: i32) -> (i32, i32) {
    %c0_i32 = arith.constant 0 : i32
    %c0_i32_0 = arith.constant 0 : i32
    return %c0_i32, %arg0 : i32, i32
  }
}

</mosaic_0001>

<llo_original>
// kernel: cross_attention_forward.1
$region0: #{cross_attention_forward.1}
  #allocation0 [shape = 'u32[]', space=smem, size = 0x4, offset = 0x4, fixed_abs, tag = 'smem constant byte address 0x4 - core index']
  #allocation1 [shape = 'u32[72,128]{1,0:T(1,128)}', space=vmem, size = 0x9000, scoped, tag = 'internal scratch']
  #allocation2 [shape = 'f32[1,1]{1,0:T(1,128)S(1)}', space=vmem, size = 0x200, scoped, tag = 'scoped memory for cross_attention_forward.1']
  %s0 = inlined_call_operand.vmem [shape: f32[16,128], index: 0, kind: input, shape index: {}]
  %s1 = inlined_call_operand.vmem [shape: f32[128,16], index: 1, kind: input, shape index: {}]
  %s2 = inlined_call_operand.vmem [shape: f32[128,1], index: 2, kind: input, shape index: {}]
  %s3 = inlined_call_operand.vmem [shape: f32[128,1], index: 3, kind: input, shape index: {}]
  %s4 = inlined_call_operand.vmem [shape: f32[128,1], index: 4, kind: input, shape index: {}]
  %s5 = inlined_call_operand.vmem [shape: f32[1,128], index: 5, kind: input, shape index: {}]
  %s6 = inlined_call_operand.<no memory space> [shape: f32[1,1], index: 6, kind: input, shape index: {}]
  %s7 = inlined_call_operand.vmem [shape: f32[1,128], index: 7, kind: output, shape index: {}]
  %s8 = sld [smem:[#allocation0]]
  $region38: #{cross_attention_forward.1} parent=0
    _
  %s10 = ssub.s32 1, %s8
  %s11 = scalar_select 0, %s10, %s8
  %v12 = vstv %s6
  %13 = vst [vmem:[#allocation2] sm:$0x1] %v12
  // Predicated region
  $region2: #{cross_attention_forward.1} parent=0 // pred_check
    _
  $region3: #{cross_attention_forward.1} parent=0 // pred_check_branch
    %15 = sbr.rel (0) target = $region5
  $region4: #{cross_attention_forward.1} parent=0 // pred_region
    _
  $region5: #{cross_attention_forward.1} parent=0 // pred_fallthru
    _
  // Predicated region
  $region6: #{cross_attention_forward.1} parent=0 // pred_check
    _
  $region7: #{cross_attention_forward.1} parent=0 // pred_check_branch
    %17 = sbr.rel (0) target = $region9
  $region8: #{cross_attention_forward.1} parent=0 // pred_region
    _
  $region9: #{cross_attention_forward.1} parent=0 // pred_fallthru
    _
  // Predicated region
  $region10: #{cross_attention_forward.1} parent=0 // pred_check
    _
  $region11: #{cross_attention_forward.1} parent=0 // pred_check_branch
    %19 = sbr.rel (0) target = $region13
  $region12: #{cross_attention_forward.1} parent=0 // pred_region
    _
  $region13: #{cross_attention_forward.1} parent=0 // pred_fallthru
    _
  // Predicated region
  $region14: #{cross_attention_forward.1} parent=0 // pred_check
    _
  $region15: #{cross_attention_forward.1} parent=0 // pred_check_branch
    %21 = sbr.rel (0) target = $region17
  $region16: #{cross_attention_forward.1} parent=0 // pred_region
    _
  $region17: #{cross_attention_forward.1} parent=0 // pred_fallthru
    _
  // Predicated region
  $region18: #{cross_attention_forward.1} parent=0 // pred_check
    _
  $region19: #{cross_attention_forward.1} parent=0 // pred_check_branch
    %23 = sbr.rel (0) target = $region21
  $region20: #{cross_attention_forward.1} parent=0 // pred_region
    _
  $region21: #{cross_attention_forward.1} parent=0 // pred_fallthru
    _
  // Predicated region
  $region22: #{cross_attention_forward.1} parent=0 // pred_check
    _
  $region23: #{cross_attention_forward.1} parent=0 // pred_check_branch
    %25 = sbr.rel (0) target = $region25
  $region24: #{cross_attention_forward.1} parent=0 // pred_region
    _
  $region25: #{cross_attention_forward.1} parent=0 // pred_fallthru
    _
  // Predicated region
  $region26: #{cross_attention_forward.1} parent=0 // pred_check
    _
  $region27: #{cross_attention_forward.1} parent=0 // pred_check_branch
    %27 = sbr.rel (0) target = $region29
  $region28: #{cross_attention_forward.1} parent=0 // pred_region
    _
  $region29: #{cross_attention_forward.1} parent=0 // pred_fallthru
    _
  %v28 = vld [vmem:[%s1] sm:$0xff]
  %v29 = vld [vmem:[%s1 + $0x8] sm:$0xff]
  %v30 = vld [vmem:[%s1 + $0x10] sm:$0xff]
  %v31 = vld [vmem:[%s1 + $0x18] sm:$0xff]
  %v32 = vld [vmem:[%s1 + $0x20] sm:$0xff]
  %v33 = vld [vmem:[%s1 + $0x28] sm:$0xff]
  %v34 = vld [vmem:[%s1 + $0x30] sm:$0xff]
  %v35 = vld [vmem:[%s1 + $0x38] sm:$0xff]
  %v36 = vld [vmem:[%s1 + $0x40] sm:$0xff]
  %v37 = vld [vmem:[%s1 + $0x48] sm:$0xff]
  %v38 = vld [vmem:[%s1 + $0x50] sm:$0xff]
  %v39 = vld [vmem:[%s1 + $0x58] sm:$0xff]
  %v40 = vld [vmem:[%s1 + $0x60] sm:$0xff]
  %v41 = vld [vmem:[%s1 + $0x68] sm:$0xff]
  %v42 = vld [vmem:[%s1 + $0x70] sm:$0xff]
  %v43 = vld [vmem:[%s1 + $0x78] sm:$0xff]
  %v44 = vld [vmem:[%s0] sm:$0xff]
  %v45 = vld [vmem:[%s0 + $0x8] sm:$0xff]
  %v46 = vld [vmem:[%s2] sm:$0xff]
  %v47 = vld [vmem:[%s2 + $0x8] sm:$0xff]
  %v48 = vld [vmem:[%s2 + $0x10] sm:$0xff]
  %v49 = vld [vmem:[%s2 + $0x18] sm:$0xff]
  %v50 = vld [vmem:[%s2 + $0x20] sm:$0xff]
  %v51 = vld [vmem:[%s2 + $0x28] sm:$0xff]
  %v52 = vld [vmem:[%s2 + $0x30] sm:$0xff]
  %v53 = vld [vmem:[%s2 + $0x38] sm:$0xff]
  %v54 = vld [vmem:[%s2 + $0x40] sm:$0xff]
  %v55 = vld [vmem:[%s2 + $0x48] sm:$0xff]
  %v56 = vld [vmem:[%s2 + $0x50] sm:$0xff]
  %v57 = vld [vmem:[%s2 + $0x58] sm:$0xff]
  %v58 = vld [vmem:[%s2 + $0x60] sm:$0xff]
  %v59 = vld [vmem:[%s2 + $0x68] sm:$0xff]
  %v60 = vld [vmem:[%s2 + $0x70] sm:$0xff]
  %v61 = vld [vmem:[%s2 + $0x78] sm:$0xff]
  %63 = vset.pattern.permute.xlu0 0
  %64 = vperm.xlu0 %63, %v46
  %v65 = vpop.permute.xlu0 %64
  %68 = vset.pattern.permute.xlu0 0
  %69 = vperm.xlu0 %68, %v47
  %v70 = vpop.permute.xlu0 %69
  %73 = vset.pattern.permute.xlu0 0
  %74 = vperm.xlu0 %73, %v48
  %v75 = vpop.permute.xlu0 %74
  %78 = vset.pattern.permute.xlu0 0
  %79 = vperm.xlu0 %78, %v49
  %v80 = vpop.permute.xlu0 %79
  %83 = vset.pattern.permute.xlu0 0
  %84 = vperm.xlu0 %83, %v50
  %v85 = vpop.permute.xlu0 %84
  %88 = vset.pattern.permute.xlu0 0
  %89 = vperm.xlu0 %88, %v51
  %v90 = vpop.permute.xlu0 %89
  %93 = vset.pattern.permute.xlu0 0
  %94 = vperm.xlu0 %93, %v52
  %v95 = vpop.permute.xlu0 %94
  %98 = vset.pattern.permute.xlu0 0
  %99 = vperm.xlu0 %98, %v53
  %v100 = vpop.permute.xlu0 %99
  %103 = vset.pattern.permute.xlu0 0
  %104 = vperm.xlu0 %103, %v54
  %v105 = vpop.permute.xlu0 %104
  %108 = vset.pattern.permute.xlu0 0
  %109 = vperm.xlu0 %108, %v55
  %v110 = vpop.permute.xlu0 %109
  %113 = vset.pattern.permute.xlu0 0
  %114 = vperm.xlu0 %113, %v56
  %v115 = vpop.permute.xlu0 %114
  %118 = vset.pattern.permute.xlu0 0
  %119 = vperm.xlu0 %118, %v57
  %v120 = vpop.permute.xlu0 %119
  %123 = vset.pattern.permute.xlu0 0
  %124 = vperm.xlu0 %123, %v58
  %v125 = vpop.permute.xlu0 %124
  %128 = vset.pattern.permute.xlu0 0
  %129 = vperm.xlu0 %128, %v59
  %v130 = vpop.permute.xlu0 %129
  %133 = vset.pattern.permute.xlu0 0
  %134 = vperm.xlu0 %133, %v60
  %v135 = vpop.permute.xlu0 %134
  %138 = vset.pattern.permute.xlu0 0
  %139 = vperm.xlu0 %138, %v61
  %v140 = vpop.permute.xlu0 %139
  %vm142 = vcmask 130048
  %v144 = vsel %vm142, %v28, 0
  %v147 = vsel %vm142, %v29, 0
  %v150 = vsel %vm142, %v30, 0
  %v153 = vsel %vm142, %v31, 0
  %v156 = vsel %vm142, %v32, 0
  %v159 = vsel %vm142, %v33, 0
  %v162 = vsel %vm142, %v34, 0
  %v165 = vsel %vm142, %v35, 0
  %v168 = vsel %vm142, %v36, 0
  %v171 = vsel %vm142, %v37, 0
  %v174 = vsel %vm142, %v38, 0
  %v177 = vsel %vm142, %v39, 0
  %v180 = vsel %vm142, %v40, 0
  %v183 = vsel %vm142, %v41, 0
  %v186 = vsel %vm142, %v42, 0
  %v189 = vsel %vm142, %v43, 0
  %191 = vmatpush.msra.mxu0 0.0
  %192 = vmatpush.msra.mxu0 0.0
  %193 = vmatpush.msra.mxu0 0.0
  %194 = vmatpush.msra.mxu0 0.0
  %195 = vmatpush.msra.mxu0 0.0
  %196 = vmatpush.msra.mxu0 0.0
  %197 = vmatpush.msra.mxu0 0.0
  %198 = vmatpush.msra.mxu0 0.0
  %199 = vmatpush.msra.mxu0 0.0
  %200 = vmatpush.msra.mxu0 0.0
  %201 = vmatpush.msra.mxu0 0.0
  %202 = vmatpush.msra.mxu0 0.0
  %203 = vmatpush.msra.mxu0 0.0
  %204 = vmatpush.msra.mxu0 0.0
  %205 = vmatpush.msra.mxu0 %v45
  %206 = vmatpush.msra.mxu0 %v44
  %207 = vmatmul.f32.gmra.mxu0 %v144
  %v208 = vpop.f32.mrf.mxu0
  %v209 = vadd.f32 %v65, %v208
  %210 = vmatmul.f32.gmra.mxu0 %v147
  %v211 = vpop.f32.mrf.mxu0
  %v212 = vadd.f32 %v70, %v211
  %213 = vmatmul.f32.gmra.mxu0 %v150
  %v214 = vpop.f32.mrf.mxu0
  %v215 = vadd.f32 %v75, %v214
  %216 = vmatmul.f32.gmra.mxu0 %v153
  %v217 = vpop.f32.mrf.mxu0
  %v218 = vadd.f32 %v80, %v217
  %219 = vmatmul.f32.gmra.mxu0 %v156
  %v220 = vpop.f32.mrf.mxu0
  %v221 = vadd.f32 %v85, %v220
  %222 = vmatmul.f32.gmra.mxu0 %v159
  %v223 = vpop.f32.mrf.mxu0
  %v224 = vadd.f32 %v90, %v223
  %225 = vmatmul.f32.gmra.mxu0 %v162
  %v226 = vpop.f32.mrf.mxu0
  %v227 = vadd.f32 %v95, %v226
  %228 = vmatmul.f32.gmra.mxu0 %v165
  %v229 = vpop.f32.mrf.mxu0
  %v230 = vadd.f32 %v100, %v229
  %231 = vmatmul.f32.gmra.mxu0 %v168
  %v232 = vpop.f32.mrf.mxu0
  %v233 = vadd.f32 %v105, %v232
  %234 = vmatmul.f32.gmra.mxu0 %v171
  %v235 = vpop.f32.mrf.mxu0
  %v236 = vadd.f32 %v110, %v235
  %237 = vmatmul.f32.gmra.mxu0 %v174
  %v238 = vpop.f32.mrf.mxu0
  %v239 = vadd.f32 %v115, %v238
  %240 = vmatmul.f32.gmra.mxu0 %v177
  %v241 = vpop.f32.mrf.mxu0
  %v242 = vadd.f32 %v120, %v241
  %243 = vmatmul.f32.gmra.mxu0 %v180
  %v244 = vpop.f32.mrf.mxu0
  %v245 = vadd.f32 %v125, %v244
  %246 = vmatmul.f32.gmra.mxu0 %v183
  %v247 = vpop.f32.mrf.mxu0
  %v248 = vadd.f32 %v130, %v247
  %249 = vmatmul.f32.gmra.mxu0 %v186
  %v250 = vpop.f32.mrf.mxu0
  %v251 = vadd.f32 %v135, %v250
  %252 = vmatmul.f32.gmra.mxu0 %v189
  %v253 = vpop.f32.mrf.mxu0
  %v254 = vadd.f32 %v140, %v253
  %255 = vdwg.mxu0
  %v256 = vmul.f32 %v209, %v209
  %v257 = vmul.f32 %v212, %v212
  %v258 = vmul.f32 %v215, %v215
  %v259 = vmul.f32 %v218, %v218
  %v260 = vmul.f32 %v221, %v221
  %v261 = vmul.f32 %v224, %v224
  %v262 = vmul.f32 %v227, %v227
  %v263 = vmul.f32 %v230, %v230
  %v264 = vmul.f32 %v233, %v233
  %v265 = vmul.f32 %v236, %v236
  %v266 = vmul.f32 %v239, %v239
  %v267 = vmul.f32 %v242, %v242
  %v268 = vmul.f32 %v245, %v245
  %v269 = vmul.f32 %v248, %v248
  %v270 = vmul.f32 %v251, %v251
  %v271 = vmul.f32 %v254, %v254
  %v272 = vadd.f32 %v256, %v257
  %v273 = vadd.f32 %v272, %v258
  %v274 = vadd.f32 %v273, %v259
  %v275 = vadd.f32 %v274, %v260
  %v276 = vadd.f32 %v275, %v261
  %v277 = vadd.f32 %v276, %v262
  %v278 = vadd.f32 %v277, %v263
  %v279 = vadd.f32 %v278, %v264
  %v280 = vadd.f32 %v279, %v265
  %v281 = vadd.f32 %v280, %v266
  %v282 = vadd.f32 %v281, %v267
  %v283 = vadd.f32 %v282, %v268
  %v284 = vadd.f32 %v283, %v269
  %v285 = vadd.f32 %v284, %v270
  %v286 = vadd.f32 %v285, %v271
  %v287 = vrot.slane %v286, 4
  %v288 = vadd.f32 %v286, %v287
  %v289 = vrot.slane %v288, 2
  %v290 = vadd.f32 %v288, %v289
  %v291 = vrot.slane %v290, 1
  %v292 = vadd.f32 %v290, %v291
  %v293 = vrcp.pop 128.0
  %v294 = vmul.f32 128.0, %v293
  %v295 = vsub.f32 1.0, %v294
  %v296 = vmul.f32 %v293, %v295
  %v297 = vadd.f32 %v293, %v296
  %vm298 = vweird.f32 %v293
  %v299 = vsel %vm298, %v293, %v297
  %v300 = vmul.f32 %v292, %v299
  %v301 = vadd.f32 %v300, 1e-05
  %v302 = vrsqrt.pop %v301
  %v303 = vmul.f32 %v302, %v301
  %v304 = vmul.f32 %v303, %v302
  %v305 = vmul.f32 0.5, %v304
  %v306 = vsub.f32 1.5, %v305
  %v307 = vmul.f32 %v302, %v306
  %vm308 = vweird.f32 %v301
  %vm309 = vweird.f32 %v302
  %vm310 = vmor %vm308, %vm309
  %v311 = vsel %vm310, %v302, %v307
  %v312 = vmul.f32 %v209, %v311
  %v313 = vmul.f32 %v212, %v311
  %v314 = vmul.f32 %v215, %v311
  %v315 = vmul.f32 %v218, %v311
  %v316 = vmul.f32 %v221, %v311
  %v317 = vmul.f32 %v224, %v311
  %v318 = vmul.f32 %v227, %v311
  %v319 = vmul.f32 %v230, %v311
  %v320 = vmul.f32 %v233, %v311
  %v321 = vmul.f32 %v236, %v311
  %v322 = vmul.f32 %v239, %v311
  %v323 = vmul.f32 %v242, %v311
  %v324 = vmul.f32 %v245, %v311
  %v325 = vmul.f32 %v248, %v311
  %v326 = vmul.f32 %v251, %v311
  %v327 = vmul.f32 %v254, %v311
  %v328 = vld [vmem:[%s3] sm:$0xff]
  %v329 = vld [vmem:[%s3 + $0x8] sm:$0xff]
  %v330 = vld [vmem:[%s3 + $0x10] sm:$0xff]
  %v331 = vld [vmem:[%s3 + $0x18] sm:$0xff]
  %v332 = vld [vmem:[%s3 + $0x20] sm:$0xff]
  %v333 = vld [vmem:[%s3 + $0x28] sm:$0xff]
  %v334 = vld [vmem:[%s3 + $0x30] sm:$0xff]
  %v335 = vld [vmem:[%s3 + $0x38] sm:$0xff]
  %v336 = vld [vmem:[%s3 + $0x40] sm:$0xff]
  %v337 = vld [vmem:[%s3 + $0x48] sm:$0xff]
  %v338 = vld [vmem:[%s3 + $0x50] sm:$0xff]
  %v339 = vld [vmem:[%s3 + $0x58] sm:$0xff]
  %v340 = vld [vmem:[%s3 + $0x60] sm:$0xff]
  %v341 = vld [vmem:[%s3 + $0x68] sm:$0xff]
  %v342 = vld [vmem:[%s3 + $0x70] sm:$0xff]
  %v343 = vld [vmem:[%s3 + $0x78] sm:$0xff]
  %345 = vset.pattern.permute.xlu0 0
  %346 = vperm.xlu0 %345, %v328
  %v347 = vpop.permute.xlu0 %346
  %350 = vset.pattern.permute.xlu0 0
  %351 = vperm.xlu0 %350, %v329
  %v352 = vpop.permute.xlu0 %351
  %355 = vset.pattern.permute.xlu0 0
  %356 = vperm.xlu0 %355, %v330
  %v357 = vpop.permute.xlu0 %356
  %360 = vset.pattern.permute.xlu0 0
  %361 = vperm.xlu0 %360, %v331
  %v362 = vpop.permute.xlu0 %361
  %365 = vset.pattern.permute.xlu0 0
  %366 = vperm.xlu0 %365, %v332
  %v367 = vpop.permute.xlu0 %366
  %370 = vset.pattern.permute.xlu0 0
  %371 = vperm.xlu0 %370, %v333
  %v372 = vpop.permute.xlu0 %371
  %375 = vset.pattern.permute.xlu0 0
  %376 = vperm.xlu0 %375, %v334
  %v377 = vpop.permute.xlu0 %376
  %380 = vset.pattern.permute.xlu0 0
  %381 = vperm.xlu0 %380, %v335
  %v382 = vpop.permute.xlu0 %381
  %385 = vset.pattern.permute.xlu0 0
  %386 = vperm.xlu0 %385, %v336
  %v387 = vpop.permute.xlu0 %386
  %390 = vset.pattern.permute.xlu0 0
  %391 = vperm.xlu0 %390, %v337
  %v392 = vpop.permute.xlu0 %391
  %395 = vset.pattern.permute.xlu0 0
  %396 = vperm.xlu0 %395, %v338
  %v397 = vpop.permute.xlu0 %396
  %400 = vset.pattern.permute.xlu0 0
  %401 = vperm.xlu0 %400, %v339
  %v402 = vpop.permute.xlu0 %401
  %405 = vset.pattern.permute.xlu0 0
  %406 = vperm.xlu0 %405, %v340
  %v407 = vpop.permute.xlu0 %406
  %410 = vset.pattern.permute.xlu0 0
  %411 = vperm.xlu0 %410, %v341
  %v412 = vpop.permute.xlu0 %411
  %415 = vset.pattern.permute.xlu0 0
  %416 = vperm.xlu0 %415, %v342
  %v417 = vpop.permute.xlu0 %416
  %420 = vset.pattern.permute.xlu0 0
  %421 = vperm.xlu0 %420, %v343
  %v422 = vpop.permute.xlu0 %421
  %v424 = vmul.f32 %v312, %v347
  %v425 = vmul.f32 %v313, %v352
  %v426 = vmul.f32 %v314, %v357
  %v427 = vmul.f32 %v315, %v362
  %v428 = vmul.f32 %v316, %v367
  %v429 = vmul.f32 %v317, %v372
  %v430 = vmul.f32 %v318, %v377
  %v431 = vmul.f32 %v319, %v382
  %v432 = vmul.f32 %v320, %v387
  %v433 = vmul.f32 %v321, %v392
  %v434 = vmul.f32 %v322, %v397
  %v435 = vmul.f32 %v323, %v402
  %v436 = vmul.f32 %v324, %v407
  %v437 = vmul.f32 %v325, %v412
  %v438 = vmul.f32 %v326, %v417
  %v439 = vmul.f32 %v327, %v422
  %v440 = vld [vmem:[%s4] sm:$0xff]
  %v441 = vld [vmem:[%s4 + $0x8] sm:$0xff]
  %v442 = vld [vmem:[%s4 + $0x10] sm:$0xff]
  %v443 = vld [vmem:[%s4 + $0x18] sm:$0xff]
  %v444 = vld [vmem:[%s4 + $0x20] sm:$0xff]
  %v445 = vld [vmem:[%s4 + $0x28] sm:$0xff]
  %v446 = vld [vmem:[%s4 + $0x30] sm:$0xff]
  %v447 = vld [vmem:[%s4 + $0x38] sm:$0xff]
  %v448 = vld [vmem:[%s4 + $0x40] sm:$0xff]
  %v449 = vld [vmem:[%s4 + $0x48] sm:$0xff]
  %v450 = vld [vmem:[%s4 + $0x50] sm:$0xff]
  %v451 = vld [vmem:[%s4 + $0x58] sm:$0xff]
  %v452 = vld [vmem:[%s4 + $0x60] sm:$0xff]
  %v453 = vld [vmem:[%s4 + $0x68] sm:$0xff]
  %v454 = vld [vmem:[%s4 + $0x70] sm:$0xff]
  %v455 = vld [vmem:[%s4 + $0x78] sm:$0xff]
  %457 = vset.pattern.permute.xlu0 0
  %458 = vperm.xlu0 %457, %v440
  %v459 = vpop.permute.xlu0 %458
  %462 = vset.pattern.permute.xlu0 0
  %463 = vperm.xlu0 %462, %v441
  %v464 = vpop.permute.xlu0 %463
  %467 = vset.pattern.permute.xlu0 0
  %468 = vperm.xlu0 %467, %v442
  %v469 = vpop.permute.xlu0 %468
  %472 = vset.pattern.permute.xlu0 0
  %473 = vperm.xlu0 %472, %v443
  %v474 = vpop.permute.xlu0 %473
  %477 = vset.pattern.permute.xlu0 0
  %478 = vperm.xlu0 %477, %v444
  %v479 = vpop.permute.xlu0 %478
  %482 = vset.pattern.permute.xlu0 0
  %483 = vperm.xlu0 %482, %v445
  %v484 = vpop.permute.xlu0 %483
  %487 = vset.pattern.permute.xlu0 0
  %488 = vperm.xlu0 %487, %v446
  %v489 = vpop.permute.xlu0 %488
  %492 = vset.pattern.permute.xlu0 0
  %493 = vperm.xlu0 %492, %v447
  %v494 = vpop.permute.xlu0 %493
  %497 = vset.pattern.permute.xlu0 0
  %498 = vperm.xlu0 %497, %v448
  %v499 = vpop.permute.xlu0 %498
  %502 = vset.pattern.permute.xlu0 0
  %503 = vperm.xlu0 %502, %v449
  %v504 = vpop.permute.xlu0 %503
  %507 = vset.pattern.permute.xlu0 0
  %508 = vperm.xlu0 %507, %v450
  %v509 = vpop.permute.xlu0 %508
  %512 = vset.pattern.permute.xlu0 0
  %513 = vperm.xlu0 %512, %v451
  %v514 = vpop.permute.xlu0 %513
  %517 = vset.pattern.permute.xlu0 0
  %518 = vperm.xlu0 %517, %v452
  %v519 = vpop.permute.xlu0 %518
  %522 = vset.pattern.permute.xlu0 0
  %523 = vperm.xlu0 %522, %v453
  %v524 = vpop.permute.xlu0 %523
  %527 = vset.pattern.permute.xlu0 0
  %528 = vperm.xlu0 %527, %v454
  %v529 = vpop.permute.xlu0 %528
  %532 = vset.pattern.permute.xlu0 0
  %533 = vperm.xlu0 %532, %v455
  %v534 = vpop.permute.xlu0 %533
  %v536 = vadd.f32 %v424, %v459
  %v537 = vadd.f32 %v425, %v464
  %v538 = vadd.f32 %v426, %v469
  %v539 = vadd.f32 %v427, %v474
  %v540 = vadd.f32 %v428, %v479
  %v541 = vadd.f32 %v429, %v484
  %v542 = vadd.f32 %v430, %v489
  %v543 = vadd.f32 %v431, %v494
  %v544 = vadd.f32 %v432, %v499
  %v545 = vadd.f32 %v433, %v504
  %v546 = vadd.f32 %v434, %v509
  %v547 = vadd.f32 %v435, %v514
  %v548 = vadd.f32 %v436, %v519
  %v549 = vadd.f32 %v437, %v524
  %v550 = vadd.f32 %v438, %v529
  %v551 = vadd.f32 %v439, %v534
  %v552 = vmax.f32 %v536, 0.0
  %v553 = vmax.f32 %v537, 0.0
  %v554 = vmax.f32 %v538, 0.0
  %v555 = vmax.f32 %v539, 0.0
  %v556 = vmax.f32 %v540, 0.0
  %v557 = vmax.f32 %v541, 0.0
  %v558 = vmax.f32 %v542, 0.0
  %v559 = vmax.f32 %v543, 0.0
  %v560 = vmax.f32 %v544, 0.0
  %v561 = vmax.f32 %v545, 0.0
  %v562 = vmax.f32 %v546, 0.0
  %v563 = vmax.f32 %v547, 0.0
  %v564 = vmax.f32 %v548, 0.0
  %v565 = vmax.f32 %v549, 0.0
  %v566 = vmax.f32 %v550, 0.0
  %v567 = vmax.f32 %v551, 0.0
  %v568 = vld [vmem:[%s5] sm:$0x1]
  %v569 = vld [vmem:[#allocation2] sm:$0x1]
  %571 = vset.pattern.permute.xlu0 0
  %572 = vperm.xlu0 %571, %v569
  %v573 = vpop.permute.xlu0 %572
  %v575 = vperm.slane %v573, 0
  %576 = vmatpush.msra.mxu0 %v567
  %577 = vmatpush.msra.mxu0 %v566
  %578 = vmatpush.msra.mxu0 %v565
  %579 = vmatpush.msra.mxu0 %v564
  %580 = vmatpush.msra.mxu0 %v563
  %581 = vmatpush.msra.mxu0 %v562
  %582 = vmatpush.msra.mxu0 %v561
  %583 = vmatpush.msra.mxu0 %v560
  %584 = vmatpush.msra.mxu0 %v559
  %585 = vmatpush.msra.mxu0 %v558
  %586 = vmatpush.msra.mxu0 %v557
  %587 = vmatpush.msra.mxu0 %v556
  %588 = vmatpush.msra.mxu0 %v555
  %589 = vmatpush.msra.mxu0 %v554
  %590 = vmatpush.msra.mxu0 %v553
  %591 = vmatpush.msra.mxu0 %v552
  %592 = vmatmul.f32.gmra.mxu0 %v568
  %v593 = vpop.f32.mrf.mxu0
  %v594 = vadd.f32 %v575, %v593
  %595 = vdwg.mxu0
  %596 = vst [vmem:[%s7] sm:$0x1] %v594
  // Predicated region
  $region30: #{cross_attention_forward.1} parent=0 // pred_check
    _
  $region31: #{cross_attention_forward.1} parent=0 // pred_check_branch
    %598 = sbr.rel (0) target = $region33
  $region32: #{cross_attention_forward.1} parent=0 // pred_region
    _
  $region33: #{cross_attention_forward.1} parent=0 // pred_fallthru
    _
  // Predicated region
  $region34: #{cross_attention_forward.1} parent=0 // pred_check
    _
  $region35: #{cross_attention_forward.1} parent=0 // pred_check_branch
    %600 = sbr.rel (0) target = $region37
  $region36: #{cross_attention_forward.1} parent=0 // pred_region
    _
  $region37: #{cross_attention_forward.1} parent=0 // pred_fallthru
    _

</llo_original>
